<compile_context>
chip_gen: v7x
topology: tpu7x:2x2x1
jax: 0.10.0
libtpu: 0.0.40
codegen_flags: <defaults>
</compile_context>

<pallas_src>
import math

import jax
import jax.numpy as jnp
from jax import lax
from jax.experimental import pallas as pl
from jax.experimental.pallas import tpu as pltpu


def _residual_block_kernel(x_ref, w1_ref, b1_ref, w2_ref, b2_ref, alpha_ref,
                           out_ref):
    """One grid step: Bt lane-packed image groups, fully matmul-formulated.

    x_ref    : (Bt, H, L)   L = P*W*C lanes (P images packed along lanes)
    w1_ref   : (3*L, L)     conv1: kw->banded, P->block-diag, kh->stacked in K
    b1_ref   : (1, L)       conv1 bias tiled across (P, W)
    w2_ref   : (3*L, L)     conv2 weights
    b2_ref   : (1, L)       conv2 bias
    alpha_ref: (1,) SMEM    PReLU shared slope (nn.PReLU() default: 1 param)
    out_ref  : (Bt, H, L)
    """
    Bt, H, L = out_ref.shape
    M = Bt * H

    x = x_ref[...].reshape(M, L).astype(jnp.float32)

    # Halo masks: after rolling along the flattened row axis, any row that
    # would read across an image boundary (or wrap around) must be zeroed,
    # which is exactly the conv's zero padding along H.
    row = lax.broadcasted_iota(jnp.int32, (M, 1), 0)
    has_up = ((row % H) != 0).astype(jnp.float32)        # row h-1 exists
    has_dn = ((row % H) != (H - 1)).astype(jnp.float32)  # row h+1 exists

    def kh_operand(z):
        # (M, L) -> (M, 3L): [row-1, row, row+1] slabs along lanes (kh=0,1,2).
        up = pltpu.roll(z, shift=1, axis=0) * has_up      # z[i-1], 0 at h==0
        dn = pltpu.roll(z, shift=M - 1, axis=0) * has_dn  # z[i+1], 0 at h==H-1
        return jnp.concatenate([up, z, dn], axis=-1)

    alpha = alpha_ref[0].astype(jnp.float32)
    b1 = b1_ref[...].astype(jnp.float32)   # (1, L) broadcasts over M rows
    b2 = b2_ref[...].astype(jnp.float32)

    # conv1 (single MXU matmul, K = 3L) + bias + PReLU.
    y = jnp.dot(kh_operand(x), w1_ref[...],
                preferred_element_type=jnp.float32) + b1
    y = jnp.where(y > 0, y, alpha * y)

    # conv2 + bias + residual add.
    y = jnp.dot(kh_operand(y), w2_ref[...],
                preferred_element_type=jnp.float32) + b2

    out_ref[...] = (x + y).reshape(Bt, H, L).astype(out_ref.dtype)


def _packed_weights(w_oihw, W, P):
    """(Cout, Cin, 3, 3) -> (3*L, L) with L = P*W*Cin.

    For each kh tap, the 3 kw taps are folded into a block-banded (W*C, W*C)
    matrix (band[(w+kw-1)*C + ci, w*C + co] = W[co, ci, kh, kw] for in-range
    columns only == zero padding along W), replicated block-diagonally over
    the P lane-packed images, then the 3 kh taps are stacked along K.
    """
    w = jnp.transpose(w_oihw, (2, 3, 1, 0)).astype(jnp.float32)  # (kh,kw,Ci,Co)
    eye_p = jnp.eye(P, dtype=jnp.float32)
    taps = []
    for kh in range(3):
        band = None
        for kw in range(3):
            sel = jnp.eye(W, dtype=jnp.float32, k=1 - kw)   # shift along W
            blk = jnp.kron(sel, w[kh, kw])                  # (W*C, W*C)
            band = blk if band is None else band + blk
        taps.append(jnp.kron(eye_p, band))                  # (L, L) block-diag
    return jnp.concatenate(taps, axis=0)                    # (3*L, L)


def _pick_lane_pack(B, WC, target_lanes=128):
    """How many images to pack along lanes to reach >= ~128 lanes."""
    if WC >= target_lanes:
        return 1
    p = max(1, target_lanes // WC)
    while p > 1 and B % p != 0:
        p -= 1
    return p


def _pick_block_pairs(G, H, target_m=128):
    """Pair-groups per grid step: aim for M = Bt*H ~ 128, keep grid >= 2 if possible."""
    divs = [d for d in range(1, G + 1) if G % d == 0]
    cands = [d for d in divs if G // d >= 2] or divs   # prefer >=2 steps (v7x)
    return min(cands, key=lambda d: abs(d * H - target_m))


def residual_block_nchw(x_nchw, w1_oihw, b1, w2_oihw, b2, alpha):
    """PyTorch-convention entry point: x is NCHW, weights are (Cout, Cin, 3, 3)."""
    B, C, H, W = x_nchw.shape
    WC = W * C
    P = _pick_lane_pack(B, WC)
    G = B // P
    L = P * WC

    # NCHW -> NHWC -> (B, H, W*C) -> pack P images along lanes -> (G, H, L).
    x2d = jnp.transpose(x_nchw, (0, 2, 3, 1)).reshape(B, H, WC)
    xpk = jnp.transpose(x2d.reshape(G, P, H, WC), (0, 2, 1, 3)).reshape(G, H, L)

    w1c = _packed_weights(w1_oihw, W, P)                 # (3L, L)
    w2c = _packed_weights(w2_oihw, W, P)
    b1t = jnp.tile(b1.astype(jnp.float32), W * P).reshape(1, L)
    b2t = jnp.tile(b2.astype(jnp.float32), W * P).reshape(1, L)
    alpha1 = jnp.asarray(alpha, jnp.float32).reshape(1)

    Bt = _pick_block_pairs(G, H)
    grid = (G // Bt,)

    grid_spec = pltpu.PrefetchScalarGridSpec(
        num_scalar_prefetch=0,
        grid=grid,
        in_specs=[
            pl.BlockSpec((Bt, H, L), lambda i: (i, 0, 0)),       # x (lane-packed)
            pl.BlockSpec((3 * L, L), lambda i: (0, 0)),          # conv1 weights
            pl.BlockSpec((1, L), lambda i: (0, 0)),              # conv1 bias
            pl.BlockSpec((3 * L, L), lambda i: (0, 0)),          # conv2 weights
            pl.BlockSpec((1, L), lambda i: (0, 0)),              # conv2 bias
            pl.BlockSpec(memory_space=pltpu.MemorySpace.SMEM),   # PReLU slope
        ],
        out_specs=pl.BlockSpec((Bt, H, L), lambda i: (i, 0, 0)),
    )

    ypk = pl.pallas_call(
        _residual_block_kernel,
        out_shape=jax.ShapeDtypeStruct((G, H, L), x_nchw.dtype),
        grid_spec=grid_spec,
        compiler_params=pltpu.CompilerParams(
            dimension_semantics=("parallel",)),
    )(xpk, w1c, b1t, w2c, b2t, alpha1)

    # (G, H, L) -> unpack lanes -> (B, H, W, C) -> NCHW.
    y2d = jnp.transpose(ypk.reshape(G, H, P, WC), (0, 2, 1, 3)).reshape(B, H, WC)
    return jnp.transpose(y2d.reshape(B, H, W, C), (0, 3, 1, 2))


def _reference_nchw(x_nchw, w1_oihw, b1, w2_oihw, b2, alpha):
    """Pure-JAX reference (matches PyTorch semantics) for a sanity check."""
    dn = ("NCHW", "OIHW", "NCHW")
    y = lax.conv_general_dilated(x_nchw, w1_oihw, (1, 1), "SAME",
                                 dimension_numbers=dn,
                                 precision=lax.Precision.HIGHEST)
    y = y + b1.reshape(1, -1, 1, 1)
    y = jnp.where(y > 0, y, alpha.reshape(()) * y)
    y = lax.conv_general_dilated(y, w2_oihw, (1, 1), "SAME",
                                 dimension_numbers=dn,
                                 precision=lax.Precision.HIGHEST)
    y = y + b2.reshape(1, -1, 1, 1)
    return x_nchw + y


if __name__ == "__main__":
    B, C, H, W = 2, 4, 16, 16
    key = jax.random.PRNGKey(0)
    kx, kw1, kb1, kw2, kb2 = jax.random.split(key, 5)

    x = jax.random.normal(kx, (B, C, H, W), dtype=jnp.float32)

    # Parameter init matching nn.Conv2d(C, C, 3, padding=1) fan-in bounds and
    # nn.PReLU() with its default single shared slope of 0.25.
    fan_in = C * 3 * 3
    bound = 1.0 / math.sqrt(fan_in)
    w1 = jax.random.uniform(kw1, (C, C, 3, 3), jnp.float32, -bound, bound)
    b1 = jax.random.uniform(kb1, (C,), jnp.float32, -bound, bound)
    w2 = jax.random.uniform(kw2, (C, C, 3, 3), jnp.float32, -bound, bound)
    b2 = jax.random.uniform(kb2, (C,), jnp.float32, -bound, bound)
    alpha = jnp.array([0.25], dtype=jnp.float32)

    out = residual_block_nchw(x, w1, b1, w2, b2, alpha)
    out = jax.block_until_ready(out)

    ref = _reference_nchw(x, w1, b1, w2, b2, alpha)
    assert out.shape == (B, C, H, W)
    assert jnp.allclose(out, ref, atol=1e-4, rtol=1e-4), float(
        jnp.max(jnp.abs(out - ref)))

    print("KERNEL_OK")
</pallas_src>

<mosaic_0001>
module attributes {stable_mosaic.version = 11 : i64} {
  func.func @_residual_block_kernel(%arg0: i32, %arg1: memref<1x16x128xf32, #tpu.memory_space<vmem>>, %arg2: memref<384x128xf32, #tpu.memory_space<vmem>>, %arg3: memref<1x128xf32, #tpu.memory_space<vmem>>, %arg4: memref<384x128xf32, #tpu.memory_space<vmem>>, %arg5: memref<1x128xf32, #tpu.memory_space<vmem>>, %arg6: memref<1xf32, #tpu.memory_space<smem>>, %arg7: memref<1x16x128xf32, #tpu.memory_space<vmem>>) attributes {dimension_semantics = [#tpu.dimension_semantics<parallel>], iteration_bounds = array<i64: 1>, scalar_prefetch = 0 : i64, scratch_operands = 0 : i64, tpu.core_type = #tpu.core_type<tc>, window_params = [{transform_indices = @transform_0, window_bounds = array<i64: 1, 16, 128>}, {pipeline_mode = #tpu.pipeline_mode<synchronous>, transform_indices = @transform_1, window_bounds = array<i64: 384, 128>}, {pipeline_mode = #tpu.pipeline_mode<synchronous>, transform_indices = @transform_2, window_bounds = array<i64: 1, 128>}, {pipeline_mode = #tpu.pipeline_mode<synchronous>, transform_indices = @transform_3, window_bounds = array<i64: 384, 128>}, {pipeline_mode = #tpu.pipeline_mode<synchronous>, transform_indices = @transform_4, window_bounds = array<i64: 1, 128>}, {transform_indices = @transform_5, window_bounds = array<i64: 1>}, {transform_indices = @transform_6, window_bounds = array<i64: 1, 16, 128>}]} {
    %c0 = arith.constant 0 : index
    %c0_0 = arith.constant 0 : index
    %c0_1 = arith.constant 0 : index
    %0 = vector.load %arg1[%c0, %c0_0, %c0_1] : memref<1x16x128xf32, #tpu.memory_space<vmem>>, vector<1x16x128xf32>
    %1 = vector.shape_cast %0 : vector<1x16x128xf32> to vector<16x128xf32>
    %2 = tpu.iota {dimensions = array<i32: 0>} : vector<16x1xi32>
    %c16_i32 = arith.constant 16 : i32
    %c0_i32 = arith.constant 0 : i32
    %3 = arith.cmpi eq, %c16_i32, %c0_i32 : i32
    %c1_i32 = arith.constant 1 : i32
    %4 = arith.select %3, %c1_i32, %c16_i32 : i32
    %5 = vector.broadcast %4 : i32 to vector<16x1xi32>
    %6 = arith.remsi %2, %5 : vector<16x1xi32>
    %c0_i32_2 = arith.constant 0 : i32
    %7 = vector.broadcast %c0_i32_2 : i32 to vector<16x1xi32>
    %8 = arith.cmpi ne, %6, %7 : vector<16x1xi32>
    %c0_i32_3 = arith.constant 0 : i32
    %9 = vector.broadcast %c0_i32_3 : i32 to vector<16x1xi32>
    %10 = arith.cmpi slt, %6, %9 : vector<16x1xi32>
    %c0_i32_4 = arith.constant 0 : i32
    %11 = arith.cmpi slt, %4, %c0_i32_4 : i32
    %12 = vector.broadcast %11 : i1 to vector<16x1xi1>
    %13 = vector.broadcast %12 : vector<16x1xi1> to vector<16x1xi1>
    %14 = arith.xori %10, %13 : vector<16x1xi1>
    %15 = arith.andi %14, %8 : vector<16x1xi1>
    %16 = vector.broadcast %4 : i32 to vector<16x1xi32>
    %17 = arith.addi %6, %16 : vector<16x1xi32>
    %18 = arith.select %15, %17, %6 : vector<16x1xi1>, vector<16x1xi32>
    %c0_i32_5 = arith.constant 0 : i32
    %19 = vector.broadcast %c0_i32_5 : i32 to vector<16x1xi32>
    %20 = arith.cmpi ne, %18, %19 : vector<16x1xi32>
    %21 = arith.extui %20 : vector<16x1xi1> to vector<16x1xi32>
    %22 = arith.sitofp %21 : vector<16x1xi32> to vector<16x1xf32>
    %c16_i32_6 = arith.constant 16 : i32
    %c0_i32_7 = arith.constant 0 : i32
    %23 = arith.cmpi eq, %c16_i32_6, %c0_i32_7 : i32
    %c1_i32_8 = arith.constant 1 : i32
    %24 = arith.select %23, %c1_i32_8, %c16_i32_6 : i32
    %25 = vector.broadcast %24 : i32 to vector<16x1xi32>
    %26 = arith.remsi %2, %25 : vector<16x1xi32>
    %c0_i32_9 = arith.constant 0 : i32
    %27 = vector.broadcast %c0_i32_9 : i32 to vector<16x1xi32>
    %28 = arith.cmpi ne, %26, %27 : vector<16x1xi32>
    %c0_i32_10 = arith.constant 0 : i32
    %29 = vector.broadcast %c0_i32_10 : i32 to vector<16x1xi32>
    %30 = arith.cmpi slt, %26, %29 : vector<16x1xi32>
    %c0_i32_11 = arith.constant 0 : i32
    %31 = arith.cmpi slt, %24, %c0_i32_11 : i32
    %32 = vector.broadcast %31 : i1 to vector<16x1xi1>
    %33 = vector.broadcast %32 : vector<16x1xi1> to vector<16x1xi1>
    %34 = arith.xori %30, %33 : vector<16x1xi1>
    %35 = arith.andi %34, %28 : vector<16x1xi1>
    %36 = vector.broadcast %24 : i32 to vector<16x1xi32>
    %37 = arith.addi %26, %36 : vector<16x1xi32>
    %38 = arith.select %35, %37, %26 : vector<16x1xi1>, vector<16x1xi32>
    %c15_i32 = arith.constant 15 : i32
    %39 = vector.broadcast %c15_i32 : i32 to vector<16x1xi32>
    %40 = arith.cmpi ne, %38, %39 : vector<16x1xi32>
    %41 = arith.extui %40 : vector<16x1xi1> to vector<16x1xi32>
    %42 = arith.sitofp %41 : vector<16x1xi32> to vector<16x1xf32>
    %c0_12 = arith.constant 0 : index
    %43 = memref.load %arg6[%c0_12] : memref<1xf32, #tpu.memory_space<smem>>
    %c0_13 = arith.constant 0 : index
    %c0_14 = arith.constant 0 : index
    %44 = vector.load %arg3[%c0_13, %c0_14] : memref<1x128xf32, #tpu.memory_space<vmem>>, vector<1x128xf32>
    %c0_15 = arith.constant 0 : index
    %c0_16 = arith.constant 0 : index
    %45 = vector.load %arg5[%c0_15, %c0_16] : memref<1x128xf32, #tpu.memory_space<vmem>>, vector<1x128xf32>
    %c1_i32_17 = arith.constant 1 : i32
    %46 = tpu.dynamic_rotate %1 by %c1_i32_17 dim 0 : vector<16x128xf32>, i32 -> vector<16x128xf32>
    %47 = vector.broadcast %22 : vector<16x1xf32> to vector<16x128xf32>
    %48 = arith.mulf %46, %47 : vector<16x128xf32>
    %c15_i32_18 = arith.constant 15 : i32
    %49 = tpu.dynamic_rotate %1 by %c15_i32_18 dim 0 : vector<16x128xf32>, i32 -> vector<16x128xf32>
    %50 = vector.broadcast %42 : vector<16x1xf32> to vector<16x128xf32>
    %51 = arith.mulf %49, %50 : vector<16x128xf32>
    %52 = tpu.concatenate %48, %1, %51 in 1 : vector<16x128xf32>, vector<16x128xf32>, vector<16x128xf32> -> vector<16x384xf32>
    %c0_19 = arith.constant 0 : index
    %c0_20 = arith.constant 0 : index
    %53 = vector.load %arg2[%c0_19, %c0_20] : memref<384x128xf32, #tpu.memory_space<vmem>>, vector<384x128xf32>
    %cst = arith.constant dense<0.000000e+00> : vector<16x128xf32>
    %54 = tpu.matmul %52, %53, %cst {dimension_numbers = #tpu.dot_dimension_numbers<[1], [0], [0], [1], [0, 0, 1, 1], [], []>} : vector<16x384xf32>, vector<384x128xf32>, vector<16x128xf32> -> vector<16x128xf32>
    %55 = vector.broadcast %44 : vector<1x128xf32> to vector<16x128xf32>
    %56 = arith.addf %54, %55 : vector<16x128xf32>
    %cst_21 = arith.constant 0.000000e+00 : f32
    %57 = vector.broadcast %cst_21 : f32 to vector<16x128xf32>
    %58 = arith.cmpf ogt, %56, %57 : vector<16x128xf32>
    %59 = vector.broadcast %43 : f32 to vector<16x128xf32>
    %60 = arith.mulf %59, %56 : vector<16x128xf32>
    %61 = arith.select %58, %56, %60 : vector<16x128xi1>, vector<16x128xf32>
    %c1_i32_22 = arith.constant 1 : i32
    %62 = tpu.dynamic_rotate %61 by %c1_i32_22 dim 0 : vector<16x128xf32>, i32 -> vector<16x128xf32>
    %63 = vector.broadcast %22 : vector<16x1xf32> to vector<16x128xf32>
    %64 = arith.mulf %62, %63 : vector<16x128xf32>
    %c15_i32_23 = arith.constant 15 : i32
    %65 = tpu.dynamic_rotate %61 by %c15_i32_23 dim 0 : vector<16x128xf32>, i32 -> vector<16x128xf32>
    %66 = vector.broadcast %42 : vector<16x1xf32> to vector<16x128xf32>
    %67 = arith.mulf %65, %66 : vector<16x128xf32>
    %68 = tpu.concatenate %64, %61, %67 in 1 : vector<16x128xf32>, vector<16x128xf32>, vector<16x128xf32> -> vector<16x384xf32>
    %c0_24 = arith.constant 0 : index
    %c0_25 = arith.constant 0 : index
    %69 = vector.load %arg4[%c0_24, %c0_25] : memref<384x128xf32, #tpu.memory_space<vmem>>, vector<384x128xf32>
    %cst_26 = arith.constant dense<0.000000e+00> : vector<16x128xf32>
    %70 = tpu.matmul %68, %69, %cst_26 {dimension_numbers = #tpu.dot_dimension_numbers<[1], [0], [0], [1], [0, 0, 1, 1], [], []>} : vector<16x384xf32>, vector<384x128xf32>, vector<16x128xf32> -> vector<16x128xf32>
    %71 = vector.broadcast %45 : vector<1x128xf32> to vector<16x128xf32>
    %72 = arith.addf %70, %71 : vector<16x128xf32>
    %73 = arith.addf %1, %72 : vector<16x128xf32>
    %74 = vector.shape_cast %73 : vector<16x128xf32> to vector<1x16x128xf32>
    %c0_27 = arith.constant 0 : index
    %c0_28 = arith.constant 0 : index
    %c0_29 = arith.constant 0 : index
    %75 = vector.load %arg7[%c0_27, %c0_28, %c0_29] : memref<1x16x128xf32, #tpu.memory_space<vmem>>, vector<1x16x128xf32>
    tpu.vector_store %arg7[%c0_27, %c0_28, %c0_29], %74 {strides = array<i32>} : memref<1x16x128xf32, #tpu.memory_space<vmem>>, vector<1x16x128xf32>,
    return
  }
  func.func @transform_0(%arg0: i32) -> (i32, i32, i32) {
    %c0_i32 = arith.constant 0 : i32
    %c0_i32_0 = arith.constant 0 : i32
    %c0_i32_1 = arith.constant 0 : i32
    return %arg0, %c0_i32, %c0_i32_0 : i32, i32, i32
  }
  func.func @transform_1(%arg0: i32) -> (i32, i32) {
    %c0_i32 = arith.constant 0 : i32
    %c0_i32_0 = arith.constant 0 : i32
    %c0_i32_1 = arith.constant 0 : i32
    return %c0_i32, %c0_i32_0 : i32, i32
  }
  func.func @transform_2(%arg0: i32) -> (i32, i32) {
    %c0_i32 = arith.constant 0 : i32
    %c0_i32_0 = arith.constant 0 : i32
    %c0_i32_1 = arith.constant 0 : i32
    return %c0_i32, %c0_i32_0 : i32, i32
  }
  func.func @transform_3(%arg0: i32) -> (i32, i32) {
    %c0_i32 = arith.constant 0 : i32
    %c0_i32_0 = arith.constant 0 : i32
    %c0_i32_1 = arith.constant 0 : i32
    return %c0_i32, %c0_i32_0 : i32, i32
  }
  func.func @transform_4(%arg0: i32) -> (i32, i32) {
    %c0_i32 = arith.constant 0 : i32
    %c0_i32_0 = arith.constant 0 : i32
    %c0_i32_1 = arith.constant 0 : i32
    return %c0_i32, %c0_i32_0 : i32, i32
  }
  func.func @transform_5(%arg0: i32) -> i32 {
    %c0_i32 = arith.constant 0 : i32
    %c0_i32_0 = arith.constant 0 : i32
    return %c0_i32 : i32
  }
  func.func @transform_6(%arg0: i32) -> (i32, i32, i32) {
    %c0_i32 = arith.constant 0 : i32
    %c0_i32_0 = arith.constant 0 : i32
    %c0_i32_1 = arith.constant 0 : i32
    return %arg0, %c0_i32, %c0_i32_0 : i32, i32, i32
  }
}

</mosaic_0001>

<llo_original>
// kernel: tpu_custom_call.1
$region0: #{tpu_custom_call.1}
  #allocation0 [shape = 'u32[]', space=smem, size = 0x4, offset = 0x4, fixed_abs, tag = 'smem constant byte address 0x4 - core index']
  #allocation1 [shape = 'u32[144,128]{1,0:T(1,128)}', space=vmem, size = 0x12000, scoped, tag = 'internal scratch']
  #allocation2 [shape = 'f32[1]{0:T(128)S(6)}', space=smem, size = 0x200, scoped, tag = 'scoped memory for tpu_custom_call.1']
  %s0 = inlined_call_operand.hbm [shape: f32[1,16,128], index: 0, kind: input, shape index: {}]
  %s1 = inlined_call_operand.hbm [shape: f32[384,128], index: 1, kind: input, shape index: {}]
  %s2 = inlined_call_operand.vmem [shape: f32[1,128], index: 2, kind: input, shape index: {}]
  %s3 = inlined_call_operand.hbm [shape: f32[384,128], index: 3, kind: input, shape index: {}]
  %s4 = inlined_call_operand.vmem [shape: f32[1,128], index: 4, kind: input, shape index: {}]
  %s5 = inlined_call_operand.<no memory space> [shape: f32[1], index: 5, kind: input, shape index: {}]
  %s6 = inlined_call_operand.hbm [shape: f32[1,16,128], index: 6, kind: output, shape index: {}]
  %s7 = sld [smem:[#allocation0]]
  $region46: #{tpu_custom_call.1} parent=0
    _
  %s9 = ssub.s32 1, %s7
  %s10 = scalar_select 0, %s9, %s7
  %11 = sst [smem:[#allocation2]] %s5
  $region1: #{tpu_custom_call.1} parent=0
    #allocation3 [shape = 'u8[8192]{0}', space=vmem, size = 0x2000, scoped, tag = 'input window, operand 0, single buffered']
    #allocation4 [shape = 's32[1]{0}', space=sflag, size = 0x4, scoped, tag = 'scoped memory for tpu_custom_call.1']
    #allocation5 [shape = 's32[1]{0}', space=sflag, size = 0x4, scoped, tag = 'scoped memory for tpu_custom_call.1']
    #allocation6 [shape = 'u8[196608]{0}', space=vmem, size = 0x30000, scoped, tag = 'input window, operand 1, single buffered']
    #allocation7 [shape = 's32[1]{0}', space=sflag, size = 0x4, scoped, tag = 'scoped memory for tpu_custom_call.1']
    #allocation8 [shape = 'u8[196608]{0}', space=vmem, size = 0x30000, scoped, tag = 'input window, operand 3, single buffered']
    #allocation9 [shape = 'u8[8192]{0}', space=vmem, size = 0x2000, scoped, tag = 'output window, operand 0, single buffered']
    %12 = vsyncpa [#allocation4], 0
    %13 = vsyncpa [#allocation7], 0
    %14 = vsyncpa [#allocation5], 0
    // Predicated region
    $region2: #{tpu_custom_call.1} parent=1 // pred_check
      _
    $region3: #{tpu_custom_call.1} parent=1 // pred_check_branch
      %16 = sbr.rel (0) target = $region5
    $region4: #{tpu_custom_call.1} parent=1 // pred_region
      %s18 = ssub.s32 256, 256
      %19 = vsyncadd [#allocation4], %s18
      %s20 = sshll.u32 [#allocation3], 4
      %s21 = int_to_ptr.vmem [resolvable:$true] %s20
      %26 = dma.hbm_to_vmem [thread:$0]  %s0, 256, %s21, [#allocation4], 128, 128, 8
    $region5: #{tpu_custom_call.1} parent=1 // pred_fallthru
      _
    // Predicated region
    $region6: #{tpu_custom_call.1} parent=1 // pred_check
      _
    $region7: #{tpu_custom_call.1} parent=1 // pred_check_branch
      %28 = sbr.rel (0) target = $region9
    $region8: #{tpu_custom_call.1} parent=1 // pred_region
      %s30 = ssub.s32 6144, 6144
      %31 = vsyncadd [#allocation7], %s30
      %s32 = sshll.u32 [#allocation6], 4
      %s33 = int_to_ptr.vmem [resolvable:$true] %s32
      %38 = dma.hbm_to_vmem [thread:$0]  %s1, 6144, %s33, [#allocation7], 128, 128, 8
    $region9: #{tpu_custom_call.1} parent=1 // pred_fallthru
      _
    // Predicated region
    $region10: #{tpu_custom_call.1} parent=1 // pred_check
      _
    $region11: #{tpu_custom_call.1} parent=1 // pred_check_branch
      %40 = sbr.rel (0) target = $region13
    $region12: #{tpu_custom_call.1} parent=1 // pred_region
      _
    $region13: #{tpu_custom_call.1} parent=1 // pred_fallthru
      _
    // Predicated region
    $region14: #{tpu_custom_call.1} parent=1 // pred_check
      _
    $region15: #{tpu_custom_call.1} parent=1 // pred_check_branch
      %42 = sbr.rel (0) target = $region17
    $region16: #{tpu_custom_call.1} parent=1 // pred_region
      %s44 = ssub.s32 6144, 6144
      %45 = vsyncadd [#allocation7], %s44
      %s46 = sshll.u32 [#allocation8], 4
      %s47 = int_to_ptr.vmem [resolvable:$true] %s46
      %52 = dma.hbm_to_vmem [thread:$0]  %s3, 6144, %s47, [#allocation7], 128, 128, 8
    $region17: #{tpu_custom_call.1} parent=1 // pred_fallthru
      _
    // Predicated region
    $region18: #{tpu_custom_call.1} parent=1 // pred_check
      _
    $region19: #{tpu_custom_call.1} parent=1 // pred_check_branch
      %54 = sbr.rel (0) target = $region21
    $region20: #{tpu_custom_call.1} parent=1 // pred_region
      _
    $region21: #{tpu_custom_call.1} parent=1 // pred_fallthru
      _
    // Predicated region
    $region22: #{tpu_custom_call.1} parent=1 // pred_check
      _
    $region23: #{tpu_custom_call.1} parent=1 // pred_check_branch
      %56 = sbr.rel (0) target = $region25
    $region24: #{tpu_custom_call.1} parent=1 // pred_region
      _
    $region25: #{tpu_custom_call.1} parent=1 // pred_fallthru
      _
    // Predicated region
    $region26: #{tpu_custom_call.1} parent=1 // pred_check
      _
    $region27: #{tpu_custom_call.1} parent=1 // pred_check_branch
      %58 = sbr.rel (0) target = $region29
    $region28: #{tpu_custom_call.1} parent=1 // pred_region
      %59 = dma.done [#allocation4], 256
    $region29: #{tpu_custom_call.1} parent=1 // pred_fallthru
      _
    // Predicated region
    $region30: #{tpu_custom_call.1} parent=1 // pred_check
      _
    $region31: #{tpu_custom_call.1} parent=1 // pred_check_branch
      %61 = sbr.rel (0) target = $region33
    $region32: #{tpu_custom_call.1} parent=1 // pred_region
      %62 = dma.done [#allocation7], 6144
    $region33: #{tpu_custom_call.1} parent=1 // pred_fallthru
      _
    // Predicated region
    $region34: #{tpu_custom_call.1} parent=1 // pred_check
      _
    $region35: #{tpu_custom_call.1} parent=1 // pred_check_branch
      %64 = sbr.rel (0) target = $region37
    $region36: #{tpu_custom_call.1} parent=1 // pred_region
      %65 = dma.done [#allocation7], 6144
    $region37: #{tpu_custom_call.1} parent=1 // pred_fallthru
      _
    %v66 = vld [vmem:[#allocation3] sm:$0xff]
    %v67 = vld [vmem:[#allocation3 + $0x8] sm:$0xff]
    %v68 = vlaneseq
    %v69 = vshrl.u32 %v68, 7
    %v70 = vadd.s32 %v69, 8
    %vm71 = vcmp.lt.s32.totalorder %v69, 0
    %v72 = vsub.s32 0, %v69
    %v73 = vsel %vm71, %v72, %v69
    %v74 = vshrl.u32 %v73, 4
    %v75 = vand.u32 %v73, 15
    %v76 = vsub.s32 0, %v75
    %v77 = vsel %vm71, %v76, %v75
    %vm78 = vcmp.lt.s32.totalorder %v70, 0
    %v79 = vsub.s32 0, %v70
    %v80 = vsel %vm78, %v79, %v70
    %v81 = vshrl.u32 %v80, 4
    %v82 = vand.u32 %v80, 15
    %v83 = vsub.s32 0, %v82
    %v84 = vsel %vm78, %v83, %v82
    %vm85 = vcmp.ne.s32.totalorder %v77, 0
    %vm86 = vcmp.ne.s32.totalorder %v84, 0
    %vm87 = vcmp.lt.s32.totalorder %v77, 0
    %vm88 = vcmp.lt.s32.totalorder %v84, 0
    %vm89 = vmand %vm87, %vm85
    %vm90 = vmand %vm88, %vm86
    %v91 = vadd.s32 %v77, 16
    %v92 = vadd.s32 %v84, 16
    %v93 = vsel %vm89, %v91, %v77
    %v94 = vsel %vm90, %v92, %v84
    %vm95 = vcmp.ne.s32.totalorder %v93, 0
    %vm96 = vcmp.ne.s32.totalorder %v94, 0
    %v97 = vsel %vm95, 1, 0
    %v98 = vsel %vm96, 1, 0
    %v99 = vcvt.s32.f32 %v97
    %v100 = vcvt.s32.f32 %v98
    %vm101 = vcmp.ne.s32.totalorder %v93, 15
    %vm102 = vcmp.ne.s32.totalorder %v94, 15
    %v103 = vsel %vm101, 1, 0
    %v104 = vsel %vm102, 1, 0
    %v105 = vcvt.s32.f32 %v103
    %v106 = vcvt.s32.f32 %v104
    %s107 = sld [smem:[#allocation2]]
    %v108 = vld [vmem:[%s2] sm:$0x1]
    %v109 = vld [vmem:[%s4] sm:$0x1]
    %v110 = vrot.slane %v66, 7
    %v111 = vrot.slane %v67, 7
    %vm112 = vcmp.lt.s32.totalorder %v69, 1
    %v113 = vsel %vm112, %v110, %v111
    %v114 = vsel %vm112, %v111, %v110
    %v115 = vmul.f32 %v114, %v99
    %v116 = vmul.f32 %v113, %v100
    %v117 = vrot.slane %v66, 1
    %v118 = vrot.slane %v67, 1
    %vm119 = vcmp.lt.s32.totalorder %v69, 7
    %v120 = vsel %vm119, %v117, %v118
    %v121 = vsel %vm119, %v118, %v117
    %v122 = vmul.f32 %v120, %v105
    %v123 = vmul.f32 %v121, %v106
    %v124 = vld [vmem:[#allocation6] sm:$0xff]
    %v125 = vld [vmem:[#allocation6 + $0x8] sm:$0xff]
    %v126 = vld [vmem:[#allocation6 + $0x10] sm:$0xff]
    %v127 = vld [vmem:[#allocation6 + $0x18] sm:$0xff]
    %v128 = vld [vmem:[#allocation6 + $0x20] sm:$0xff]
    %v129 = vld [vmem:[#allocation6 + $0x28] sm:$0xff]
    %v130 = vld [vmem:[#allocation6 + $0x30] sm:$0xff]
    %v131 = vld [vmem:[#allocation6 + $0x38] sm:$0xff]
    %v132 = vld [vmem:[#allocation6 + $0x40] sm:$0xff]
    %v133 = vld [vmem:[#allocation6 + $0x48] sm:$0xff]
    %v134 = vld [vmem:[#allocation6 + $0x50] sm:$0xff]
    %v135 = vld [vmem:[#allocation6 + $0x58] sm:$0xff]
    %v136 = vld [vmem:[#allocation6 + $0x60] sm:$0xff]
    %v137 = vld [vmem:[#allocation6 + $0x68] sm:$0xff]
    %v138 = vld [vmem:[#allocation6 + $0x70] sm:$0xff]
    %v139 = vld [vmem:[#allocation6 + $0x78] sm:$0xff]
    %v140 = vld [vmem:[#allocation6 + $0x80] sm:$0xff]
    %v141 = vld [vmem:[#allocation6 + $0x88] sm:$0xff]
    %v142 = vld [vmem:[#allocation6 + $0x90] sm:$0xff]
    %v143 = vld [vmem:[#allocation6 + $0x98] sm:$0xff]
    %v144 = vld [vmem:[#allocation6 + $0xa0] sm:$0xff]
    %v145 = vld [vmem:[#allocation6 + $0xa8] sm:$0xff]
    %v146 = vld [vmem:[#allocation6 + $0xb0] sm:$0xff]
    %v147 = vld [vmem:[#allocation6 + $0xb8] sm:$0xff]
    %v148 = vld [vmem:[#allocation6 + $0xc0] sm:$0xff]
    %v149 = vld [vmem:[#allocation6 + $0xc8] sm:$0xff]
    %v150 = vld [vmem:[#allocation6 + $0xd0] sm:$0xff]
    %v151 = vld [vmem:[#allocation6 + $0xd8] sm:$0xff]
    %v152 = vld [vmem:[#allocation6 + $0xe0] sm:$0xff]
    %v153 = vld [vmem:[#allocation6 + $0xe8] sm:$0xff]
    %v154 = vld [vmem:[#allocation6 + $0xf0] sm:$0xff]
    %v155 = vld [vmem:[#allocation6 + $0xf8] sm:$0xff]
    %v156 = vld [vmem:[#allocation6 + $0x100] sm:$0xff]
    %v157 = vld [vmem:[#allocation6 + $0x108] sm:$0xff]
    %v158 = vld [vmem:[#allocation6 + $0x110] sm:$0xff]
    %v159 = vld [vmem:[#allocation6 + $0x118] sm:$0xff]
    %v160 = vld [vmem:[#allocation6 + $0x120] sm:$0xff]
    %v161 = vld [vmem:[#allocation6 + $0x128] sm:$0xff]
    %v162 = vld [vmem:[#allocation6 + $0x130] sm:$0xff]
    %v163 = vld [vmem:[#allocation6 + $0x138] sm:$0xff]
    %v164 = vld [vmem:[#allocation6 + $0x140] sm:$0xff]
    %v165 = vld [vmem:[#allocation6 + $0x148] sm:$0xff]
    %v166 = vld [vmem:[#allocation6 + $0x150] sm:$0xff]
    %v167 = vld [vmem:[#allocation6 + $0x158] sm:$0xff]
    %v168 = vld [vmem:[#allocation6 + $0x160] sm:$0xff]
    %v169 = vld [vmem:[#allocation6 + $0x168] sm:$0xff]
    %v170 = vld [vmem:[#allocation6 + $0x170] sm:$0xff]
    %v171 = vld [vmem:[#allocation6 + $0x178] sm:$0xff]
    %v173 = vlaneseq
    %v174 = vshrl.u32 %v173, 7
    %v175 = vsub.s32 0, %v174
    %v176 = vrot.slane %v108, %v175
    %178 = vmatprep.subr.mxu0 0.0
    %179 = vmatpush1.msra.mxu0 %v124
    %180 = vmatprep.subr.mxu0 0.0
    %181 = vmatpush1.msra.mxu0 %v125
    %182 = vmatprep.subr.mxu0 0.0
    %183 = vmatpush1.msra.mxu0 %v126
    %184 = vmatprep.subr.mxu0 0.0
    %185 = vmatpush1.msra.mxu0 %v127
    %186 = vmatprep.subr.mxu0 0.0
    %187 = vmatpush1.msra.mxu0 %v128
    %188 = vmatprep.subr.mxu0 0.0
    %189 = vmatpush1.msra.mxu0 %v129
    %190 = vmatprep.subr.mxu0 0.0
    %191 = vmatpush1.msra.mxu0 %v130
    %192 = vmatprep.subr.mxu0 0.0
    %193 = vmatpush1.msra.mxu0 %v131
    %194 = vmatprep.subr.mxu0 0.0
    %195 = vmatpush1.msra.mxu0 %v132
    %196 = vmatprep.subr.mxu0 0.0
    %197 = vmatpush1.msra.mxu0 %v133
    %198 = vmatprep.subr.mxu0 0.0
    %199 = vmatpush1.msra.mxu0 %v134
    %200 = vmatprep.subr.mxu0 0.0
    %201 = vmatpush1.msra.mxu0 %v135
    %202 = vmatprep.subr.mxu0 0.0
    %203 = vmatpush1.msra.mxu0 %v136
    %204 = vmatprep.subr.mxu0 0.0
    %205 = vmatpush1.msra.mxu0 %v137
    %206 = vmatprep.subr.mxu0 0.0
    %207 = vmatpush1.msra.mxu0 %v138
    %208 = vmatprep.subr.mxu0 0.0
    %209 = vmatpush1.msra.mxu0 %v139
    %210 = vmatprep.subr.mxu0 0.0
    %211 = vmatpush1.msra.mxu0 %v140
    %212 = vmatprep.subr.mxu0 0.0
    %213 = vmatpush1.msra.mxu0 %v141
    %214 = vmatprep.subr.mxu0 0.0
    %215 = vmatpush1.msra.mxu0 %v142
    %216 = vmatprep.subr.mxu0 0.0
    %217 = vmatpush1.msra.mxu0 %v143
    %218 = vmatprep.subr.mxu0 0.0
    %219 = vmatpush1.msra.mxu0 %v144
    %220 = vmatprep.subr.mxu0 0.0
    %221 = vmatpush1.msra.mxu0 %v145
    %222 = vmatprep.subr.mxu0 0.0
    %223 = vmatpush1.msra.mxu0 %v146
    %224 = vmatprep.subr.mxu0 0.0
    %225 = vmatpush1.msra.mxu0 %v147
    %226 = vmatprep.subr.mxu0 0.0
    %227 = vmatpush1.msra.mxu0 %v148
    %228 = vmatprep.subr.mxu0 0.0
    %229 = vmatpush1.msra.mxu0 %v149
    %230 = vmatprep.subr.mxu0 0.0
    %231 = vmatpush1.msra.mxu0 %v150
    %232 = vmatprep.subr.mxu0 0.0
    %233 = vmatpush1.msra.mxu0 %v151
    %234 = vmatprep.subr.mxu0 0.0
    %235 = vmatpush1.msra.mxu0 %v152
    %236 = vmatprep.subr.mxu0 0.0
    %237 = vmatpush1.msra.mxu0 %v153
    %238 = vmatprep.subr.mxu0 0.0
    %239 = vmatpush1.msra.mxu0 %v154
    %240 = vmatprep.subr.mxu0 0.0
    %241 = vmatpush1.msra.mxu0 %v155
    %242 = vmatprep.mubr.f32.mxu0 %v66
    %243 = vmatmul.mubr.f32.gmra.mrb[0].mxu0 %v115
    %v244 = vpop.f32.mrb[0].mxu0
    %v245 = vadd.f32 %v176, %v244
    %v246 = vpop.f32.mrb[0].mxu0
    %247 = vmatprep.mubr.f32.mxu0 %v67
    %248 = vmatmul.mubr.f32.gmra.mrb[0].mxu0 %v116
    %v249 = vpop.f32.mrb[0].mxu0
    %v250 = vadd.f32 %v176, %v249
    %v251 = vpop.f32.mrb[0].mxu0
    %252 = vdwg.mxu0
    %253 = vmatprep.subr.mxu0 0.0
    %254 = vmatpush1.msra.mxu0 %v156
    %255 = vmatprep.subr.mxu0 0.0
    %256 = vmatpush1.msra.mxu0 %v157
    %257 = vmatprep.subr.mxu0 0.0
    %258 = vmatpush1.msra.mxu0 %v158
    %259 = vmatprep.subr.mxu0 0.0
    %260 = vmatpush1.msra.mxu0 %v159
    %261 = vmatprep.subr.mxu0 0.0
    %262 = vmatpush1.msra.mxu0 %v160
    %263 = vmatprep.subr.mxu0 0.0
    %264 = vmatpush1.msra.mxu0 %v161
    %265 = vmatprep.subr.mxu0 0.0
    %266 = vmatpush1.msra.mxu0 %v162
    %267 = vmatprep.subr.mxu0 0.0
    %268 = vmatpush1.msra.mxu0 %v163
    %269 = vmatprep.subr.mxu0 0.0
    %270 = vmatpush1.msra.mxu0 %v164
    %271 = vmatprep.subr.mxu0 0.0
    %272 = vmatpush1.msra.mxu0 %v165
    %273 = vmatprep.subr.mxu0 0.0
    %274 = vmatpush1.msra.mxu0 %v166
    %275 = vmatprep.subr.mxu0 0.0
    %276 = vmatpush1.msra.mxu0 %v167
    %277 = vmatprep.subr.mxu0 0.0
    %278 = vmatpush1.msra.mxu0 %v168
    %279 = vmatprep.subr.mxu0 0.0
    %280 = vmatpush1.msra.mxu0 %v169
    %281 = vmatprep.subr.mxu0 0.0
    %282 = vmatpush1.msra.mxu0 %v170
    %283 = vmatprep.subr.mxu0 0.0
    %284 = vmatpush1.msra.mxu0 %v171
    %285 = vmatprep.subr.mxu0 0.0
    %286 = vmatpush1.msra.mxu0 0.0
    %287 = vmatprep.subr.mxu0 0.0
    %288 = vmatpush1.msra.mxu0 0.0
    %289 = vmatprep.subr.mxu0 0.0
    %290 = vmatpush1.msra.mxu0 0.0
    %291 = vmatprep.subr.mxu0 0.0
    %292 = vmatpush1.msra.mxu0 0.0
    %293 = vmatprep.subr.mxu0 0.0
    %294 = vmatpush1.msra.mxu0 0.0
    %295 = vmatprep.subr.mxu0 0.0
    %296 = vmatpush1.msra.mxu0 0.0
    %297 = vmatprep.subr.mxu0 0.0
    %298 = vmatpush1.msra.mxu0 0.0
    %299 = vmatprep.subr.mxu0 0.0
    %300 = vmatpush1.msra.mxu0 0.0
    %301 = vmatprep.subr.mxu0 0.0
    %302 = vmatpush1.msra.mxu0 0.0
    %303 = vmatprep.subr.mxu0 0.0
    %304 = vmatpush1.msra.mxu0 0.0
    %305 = vmatprep.subr.mxu0 0.0
    %306 = vmatpush1.msra.mxu0 0.0
    %307 = vmatprep.subr.mxu0 0.0
    %308 = vmatpush1.msra.mxu0 0.0
    %309 = vmatprep.subr.mxu0 0.0
    %310 = vmatpush1.msra.mxu0 0.0
    %311 = vmatprep.subr.mxu0 0.0
    %312 = vmatpush1.msra.mxu0 0.0
    %313 = vmatprep.subr.mxu0 0.0
    %314 = vmatpush1.msra.mxu0 0.0
    %315 = vmatprep.subr.mxu0 0.0
    %316 = vmatpush1.msra.mxu0 0.0
    %317 = vmatprep.mubr.f32.mxu0 0.0
    %318 = vmatmul.mubr.f32.gmra.mrb[0].mxu0 %v122
    %v319 = vpop.f32.mrb[0].mxu0
    %v320 = vadd.f32 %v245, %v319
    %v321 = vpop.f32.mrb[0].mxu0
    %322 = vmatprep.mubr.f32.mxu0 0.0
    %323 = vmatmul.mubr.f32.gmra.mrb[0].mxu0 %v123
    %v324 = vpop.f32.mrb[0].mxu0
    %v325 = vadd.f32 %v250, %v324
    %v326 = vpop.f32.mrb[0].mxu0
    %327 = vdwg.mxu0
    %vm328 = vcmp.gt.f32.partialorder %v320, 0.0
    %vm329 = vcmp.gt.f32.partialorder %v325, 0.0
    %v330 = vstv %s107
    %v331 = vmul.f32 %v330, %v320
    %v332 = vmul.f32 %v330, %v325
    %v333 = vsel %vm328, %v320, %v331
    %v334 = vsel %vm329, %v325, %v332
    %v335 = vrot.slane %v333, 7
    %v336 = vrot.slane %v334, 7
    %v337 = vsel %vm112, %v335, %v336
    %v338 = vsel %vm112, %v336, %v335
    %v339 = vmul.f32 %v338, %v99
    %v340 = vmul.f32 %v337, %v100
    %v341 = vrot.slane %v333, 1
    %v342 = vrot.slane %v334, 1
    %v343 = vsel %vm119, %v341, %v342
    %v344 = vsel %vm119, %v342, %v341
    %v345 = vmul.f32 %v343, %v105
    %v346 = vmul.f32 %v344, %v106
    %v347 = vld [vmem:[#allocation8] sm:$0xff]
    %v348 = vld [vmem:[#allocation8 + $0x8] sm:$0xff]
    %v349 = vld [vmem:[#allocation8 + $0x10] sm:$0xff]
    %v350 = vld [vmem:[#allocation8 + $0x18] sm:$0xff]
    %v351 = vld [vmem:[#allocation8 + $0x20] sm:$0xff]
    %v352 = vld [vmem:[#allocation8 + $0x28] sm:$0xff]
    %v353 = vld [vmem:[#allocation8 + $0x30] sm:$0xff]
    %v354 = vld [vmem:[#allocation8 + $0x38] sm:$0xff]
    %v355 = vld [vmem:[#allocation8 + $0x40] sm:$0xff]
    %v356 = vld [vmem:[#allocation8 + $0x48] sm:$0xff]
    %v357 = vld [vmem:[#allocation8 + $0x50] sm:$0xff]
    %v358 = vld [vmem:[#allocation8 + $0x58] sm:$0xff]
    %v359 = vld [vmem:[#allocation8 + $0x60] sm:$0xff]
    %v360 = vld [vmem:[#allocation8 + $0x68] sm:$0xff]
    %v361 = vld [vmem:[#allocation8 + $0x70] sm:$0xff]
    %v362 = vld [vmem:[#allocation8 + $0x78] sm:$0xff]
    %v363 = vld [vmem:[#allocation8 + $0x80] sm:$0xff]
    %v364 = vld [vmem:[#allocation8 + $0x88] sm:$0xff]
    %v365 = vld [vmem:[#allocation8 + $0x90] sm:$0xff]
    %v366 = vld [vmem:[#allocation8 + $0x98] sm:$0xff]
    %v367 = vld [vmem:[#allocation8 + $0xa0] sm:$0xff]
    %v368 = vld [vmem:[#allocation8 + $0xa8] sm:$0xff]
    %v369 = vld [vmem:[#allocation8 + $0xb0] sm:$0xff]
    %v370 = vld [vmem:[#allocation8 + $0xb8] sm:$0xff]
    %v371 = vld [vmem:[#allocation8 + $0xc0] sm:$0xff]
    %v372 = vld [vmem:[#allocation8 + $0xc8] sm:$0xff]
    %v373 = vld [vmem:[#allocation8 + $0xd0] sm:$0xff]
    %v374 = vld [vmem:[#allocation8 + $0xd8] sm:$0xff]
    %v375 = vld [vmem:[#allocation8 + $0xe0] sm:$0xff]
    %v376 = vld [vmem:[#allocation8 + $0xe8] sm:$0xff]
    %v377 = vld [vmem:[#allocation8 + $0xf0] sm:$0xff]
    %v378 = vld [vmem:[#allocation8 + $0xf8] sm:$0xff]
    %v379 = vld [vmem:[#allocation8 + $0x100] sm:$0xff]
    %v380 = vld [vmem:[#allocation8 + $0x108] sm:$0xff]
    %v381 = vld [vmem:[#allocation8 + $0x110] sm:$0xff]
    %v382 = vld [vmem:[#allocation8 + $0x118] sm:$0xff]
    %v383 = vld [vmem:[#allocation8 + $0x120] sm:$0xff]
    %v384 = vld [vmem:[#allocation8 + $0x128] sm:$0xff]
    %v385 = vld [vmem:[#allocation8 + $0x130] sm:$0xff]
    %v386 = vld [vmem:[#allocation8 + $0x138] sm:$0xff]
    %v387 = vld [vmem:[#allocation8 + $0x140] sm:$0xff]
    %v388 = vld [vmem:[#allocation8 + $0x148] sm:$0xff]
    %v389 = vld [vmem:[#allocation8 + $0x150] sm:$0xff]
    %v390 = vld [vmem:[#allocation8 + $0x158] sm:$0xff]
    %v391 = vld [vmem:[#allocation8 + $0x160] sm:$0xff]
    %v392 = vld [vmem:[#allocation8 + $0x168] sm:$0xff]
    %v393 = vld [vmem:[#allocation8 + $0x170] sm:$0xff]
    %v394 = vld [vmem:[#allocation8 + $0x178] sm:$0xff]
    %v396 = vlaneseq
    %v397 = vshrl.u32 %v396, 7
    %v398 = vsub.s32 0, %v397
    %v399 = vrot.slane %v109, %v398
    %401 = vmatprep.subr.mxu0 0.0
    %402 = vmatpush1.msra.mxu0 %v347
    %403 = vmatprep.subr.mxu0 0.0
    %404 = vmatpush1.msra.mxu0 %v348
    %405 = vmatprep.subr.mxu0 0.0
    %406 = vmatpush1.msra.mxu0 %v349
    %407 = vmatprep.subr.mxu0 0.0
    %408 = vmatpush1.msra.mxu0 %v350
    %409 = vmatprep.subr.mxu0 0.0
    %410 = vmatpush1.msra.mxu0 %v351
    %411 = vmatprep.subr.mxu0 0.0
    %412 = vmatpush1.msra.mxu0 %v352
    %413 = vmatprep.subr.mxu0 0.0
    %414 = vmatpush1.msra.mxu0 %v353
    %415 = vmatprep.subr.mxu0 0.0
    %416 = vmatpush1.msra.mxu0 %v354
    %417 = vmatprep.subr.mxu0 0.0
    %418 = vmatpush1.msra.mxu0 %v355
    %419 = vmatprep.subr.mxu0 0.0
    %420 = vmatpush1.msra.mxu0 %v356
    %421 = vmatprep.subr.mxu0 0.0
    %422 = vmatpush1.msra.mxu0 %v357
    %423 = vmatprep.subr.mxu0 0.0
    %424 = vmatpush1.msra.mxu0 %v358
    %425 = vmatprep.subr.mxu0 0.0
    %426 = vmatpush1.msra.mxu0 %v359
    %427 = vmatprep.subr.mxu0 0.0
    %428 = vmatpush1.msra.mxu0 %v360
    %429 = vmatprep.subr.mxu0 0.0
    %430 = vmatpush1.msra.mxu0 %v361
    %431 = vmatprep.subr.mxu0 0.0
    %432 = vmatpush1.msra.mxu0 %v362
    %433 = vmatprep.subr.mxu0 0.0
    %434 = vmatpush1.msra.mxu0 %v363
    %435 = vmatprep.subr.mxu0 0.0
    %436 = vmatpush1.msra.mxu0 %v364
    %437 = vmatprep.subr.mxu0 0.0
    %438 = vmatpush1.msra.mxu0 %v365
    %439 = vmatprep.subr.mxu0 0.0
    %440 = vmatpush1.msra.mxu0 %v366
    %441 = vmatprep.subr.mxu0 0.0
    %442 = vmatpush1.msra.mxu0 %v367
    %443 = vmatprep.subr.mxu0 0.0
    %444 = vmatpush1.msra.mxu0 %v368
    %445 = vmatprep.subr.mxu0 0.0
    %446 = vmatpush1.msra.mxu0 %v369
    %447 = vmatprep.subr.mxu0 0.0
    %448 = vmatpush1.msra.mxu0 %v370
    %449 = vmatprep.subr.mxu0 0.0
    %450 = vmatpush1.msra.mxu0 %v371
    %451 = vmatprep.subr.mxu0 0.0
    %452 = vmatpush1.msra.mxu0 %v372
    %453 = vmatprep.subr.mxu0 0.0
    %454 = vmatpush1.msra.mxu0 %v373
    %455 = vmatprep.subr.mxu0 0.0
    %456 = vmatpush1.msra.mxu0 %v374
    %457 = vmatprep.subr.mxu0 0.0
    %458 = vmatpush1.msra.mxu0 %v375
    %459 = vmatprep.subr.mxu0 0.0
    %460 = vmatpush1.msra.mxu0 %v376
    %461 = vmatprep.subr.mxu0 0.0
    %462 = vmatpush1.msra.mxu0 %v377
    %463 = vmatprep.subr.mxu0 0.0
    %464 = vmatpush1.msra.mxu0 %v378
    %465 = vmatprep.mubr.f32.mxu0 %v333
    %466 = vmatmul.mubr.f32.gmra.mrb[0].mxu0 %v339
    %v467 = vpop.f32.mrb[0].mxu0
    %v468 = vadd.f32 %v399, %v467
    %v469 = vpop.f32.mrb[0].mxu0
    %470 = vmatprep.mubr.f32.mxu0 %v334
    %471 = vmatmul.mubr.f32.gmra.mrb[0].mxu0 %v340
    %v472 = vpop.f32.mrb[0].mxu0
    %v473 = vadd.f32 %v399, %v472
    %v474 = vpop.f32.mrb[0].mxu0
    %475 = vdwg.mxu0
    %476 = vmatprep.subr.mxu0 0.0
    %477 = vmatpush1.msra.mxu0 %v379
    %478 = vmatprep.subr.mxu0 0.0
    %479 = vmatpush1.msra.mxu0 %v380
    %480 = vmatprep.subr.mxu0 0.0
    %481 = vmatpush1.msra.mxu0 %v381
    %482 = vmatprep.subr.mxu0 0.0
    %483 = vmatpush1.msra.mxu0 %v382
    %484 = vmatprep.subr.mxu0 0.0
    %485 = vmatpush1.msra.mxu0 %v383
    %486 = vmatprep.subr.mxu0 0.0
    %487 = vmatpush1.msra.mxu0 %v384
    %488 = vmatprep.subr.mxu0 0.0
    %489 = vmatpush1.msra.mxu0 %v385
    %490 = vmatprep.subr.mxu0 0.0
    %491 = vmatpush1.msra.mxu0 %v386
    %492 = vmatprep.subr.mxu0 0.0
    %493 = vmatpush1.msra.mxu0 %v387
    %494 = vmatprep.subr.mxu0 0.0
    %495 = vmatpush1.msra.mxu0 %v388
    %496 = vmatprep.subr.mxu0 0.0
    %497 = vmatpush1.msra.mxu0 %v389
    %498 = vmatprep.subr.mxu0 0.0
    %499 = vmatpush1.msra.mxu0 %v390
    %500 = vmatprep.subr.mxu0 0.0
    %501 = vmatpush1.msra.mxu0 %v391
    %502 = vmatprep.subr.mxu0 0.0
    %503 = vmatpush1.msra.mxu0 %v392
    %504 = vmatprep.subr.mxu0 0.0
    %505 = vmatpush1.msra.mxu0 %v393
    %506 = vmatprep.subr.mxu0 0.0
    %507 = vmatpush1.msra.mxu0 %v394
    %508 = vmatprep.subr.mxu0 0.0
    %509 = vmatpush1.msra.mxu0 0.0
    %510 = vmatprep.subr.mxu0 0.0
    %511 = vmatpush1.msra.mxu0 0.0
    %512 = vmatprep.subr.mxu0 0.0
    %513 = vmatpush1.msra.mxu0 0.0
    %514 = vmatprep.subr.mxu0 0.0
    %515 = vmatpush1.msra.mxu0 0.0
    %516 = vmatprep.subr.mxu0 0.0
    %517 = vmatpush1.msra.mxu0 0.0
    %518 = vmatprep.subr.mxu0 0.0
    %519 = vmatpush1.msra.mxu0 0.0
    %520 = vmatprep.subr.mxu0 0.0
    %521 = vmatpush1.msra.mxu0 0.0
    %522 = vmatprep.subr.mxu0 0.0
    %523 = vmatpush1.msra.mxu0 0.0
    %524 = vmatprep.subr.mxu0 0.0
    %525 = vmatpush1.msra.mxu0 0.0
    %526 = vmatprep.subr.mxu0 0.0
    %527 = vmatpush1.msra.mxu0 0.0
    %528 = vmatprep.subr.mxu0 0.0
    %529 = vmatpush1.msra.mxu0 0.0
    %530 = vmatprep.subr.mxu0 0.0
    %531 = vmatpush1.msra.mxu0 0.0
    %532 = vmatprep.subr.mxu0 0.0
    %533 = vmatpush1.msra.mxu0 0.0
    %534 = vmatprep.subr.mxu0 0.0
    %535 = vmatpush1.msra.mxu0 0.0
    %536 = vmatprep.subr.mxu0 0.0
    %537 = vmatpush1.msra.mxu0 0.0
    %538 = vmatprep.subr.mxu0 0.0
    %539 = vmatpush1.msra.mxu0 0.0
    %540 = vmatprep.mubr.f32.mxu0 0.0
    %541 = vmatmul.mubr.f32.gmra.mrb[0].mxu0 %v345
    %v542 = vpop.f32.mrb[0].mxu0
    %v543 = vadd.f32 %v468, %v542
    %v544 = vpop.f32.mrb[0].mxu0
    %545 = vmatprep.mubr.f32.mxu0 0.0
    %546 = vmatmul.mubr.f32.gmra.mrb[0].mxu0 %v346
    %v547 = vpop.f32.mrb[0].mxu0
    %v548 = vadd.f32 %v473, %v547
    %v549 = vpop.f32.mrb[0].mxu0
    %550 = vdwg.mxu0
    %v551 = vadd.f32 %v66, %v543
    %v552 = vadd.f32 %v67, %v548
    %553 = vst [vmem:[#allocation9] sm:$0xff] %v551
    %554 = vst [vmem:[#allocation9 + $0x8] sm:$0xff] %v552
    // Predicated region
    $region38: #{tpu_custom_call.1} parent=1 // pred_check
      _
    $region39: #{tpu_custom_call.1} parent=1 // pred_check_branch
      %556 = sbr.rel (0) target = $region41
    $region40: #{tpu_custom_call.1} parent=1 // pred_region
      %s558 = ssub.s32 256, 256
      %559 = vsyncadd [#allocation5], %s558
      %s560 = sshll.u32 [#allocation9], 4
      %s561 = int_to_ptr.vmem [resolvable:$true] %s560
      %566 = dma.vmem_to_hbm [thread:$0]  %s561, 256, %s6, [#allocation5], 128, 128, 8
    $region41: #{tpu_custom_call.1} parent=1 // pred_fallthru
      _
    // Predicated region
    $region42: #{tpu_custom_call.1} parent=1 // pred_check
      _
    $region43: #{tpu_custom_call.1} parent=1 // pred_check_branch
      %568 = sbr.rel (0) target = $region45
    $region44: #{tpu_custom_call.1} parent=1 // pred_region
      %569 = dma.done [#allocation5], 256
    $region45: #{tpu_custom_call.1} parent=1 // pred_fallthru
      _
    %570 = vsyncpa [#allocation4], 1
    %571 = vsyncpa [#allocation7], 1
    %572 = vsyncpa [#allocation5], 1

</llo_original>
